<compile_context>
chip_gen: v7x
topology: tpu7x:2x2x1
jax: 0.10.0
libtpu: 0.0.40
codegen_flags: <defaults>
</compile_context>

<pallas_src>
import functools

import jax
import jax.numpy as jnp
from jax.experimental import pallas as pl
from jax.experimental.pallas import tpu as pltpu

_LANE = 128      # lane width: pad every feature dim to this
_SUBLANE = 16    # bf16-safe sublane multiple for batch tiles


def _round_up(x, m):
    return (x + m - 1) // m * m


def _mlp_kernel(*refs, n_layers):
    # refs = (x_ref, w0, b0, w1, b1, ..., wL, bL, out_ref)
    x_ref = refs[0]
    out_ref = refs[-1]
    param_refs = refs[1:-1]
    assert len(param_refs) == 2 * n_layers

    h = x_ref[...]                           # f32 activations (TB, 128)
    for i in range(n_layers):
        w = param_refs[2 * i][...]           # bf16 weights, lane-padded
        b = param_refs[2 * i + 1][...]       # f32 bias (1, Npad)
        # bf16 x bf16 on the MXU, f32 accumulate; bias add / ReLU stay f32.
        h = jnp.dot(h.astype(jnp.bfloat16), w,
                    preferred_element_type=jnp.float32) + b
        if i < n_layers - 1:                 # ReLU on all but the last layer
            h = jnp.maximum(h, 0.0)
    out_ref[...] = h


def init_params(key, width, depth, input_size, output_size):
    """Deterministic init mimicking nn.Linear (uniform +/- 1/sqrt(fan_in))."""
    dims = [input_size] + [width] * (depth + 1) + [output_size]
    params = []
    for i in range(len(dims) - 1):
        fan_in, fan_out = dims[i], dims[i + 1]
        key, kw, kb = jax.random.split(key, 3)
        bound = 1.0 / float(fan_in) ** 0.5
        w = jax.random.uniform(kw, (fan_in, fan_out), jnp.float32, -bound, bound)
        b = jax.random.uniform(kb, (1, fan_out), jnp.float32, -bound, bound)
        params.append((w, b))
    return params


def net_forward(x, params, input_size):
    # Glue: flatten like x.view(-1, input_size) in the PyTorch module.
    x2d = x.reshape(-1, input_size).astype(jnp.float32)
    batch = x2d.shape[0]
    output_size = params[-1][0].shape[1]
    n_layers = len(params)

    # ---- wrapper-side padding: features -> 128 lanes, weights -> bf16 ------
    dims = [input_size] + [w.shape[1] for w, _ in params]
    dims_pad = [_round_up(d, _LANE) for d in dims]

    padded_params = []
    for i, (w, b) in enumerate(params):
        kp, np_ = dims_pad[i], dims_pad[i + 1]
        wp = jnp.zeros((kp, np_), jnp.bfloat16)
        wp = wp.at[: w.shape[0], : w.shape[1]].set(w.astype(jnp.bfloat16))
        bp = jnp.zeros((1, np_), jnp.float32)
        bp = bp.at[:, : b.shape[1]].set(b.astype(jnp.float32))
        padded_params.extend([wp, bp])

    # ---- batch tile: multiple of 16 sublanes, capped at an MXU-sized 256 ---
    tb = min(256, _round_up(batch, _SUBLANE))
    b_pad = _round_up(batch, tb)
    x_pad = jnp.zeros((b_pad, dims_pad[0]), jnp.float32)
    x_pad = x_pad.at[:batch, :input_size].set(x2d)

    grid = (b_pad // tb,)

    in_specs = [pl.BlockSpec((tb, dims_pad[0]), lambda i: (i, 0))]
    for li in range(n_layers):
        kp, np_ = dims_pad[li], dims_pad[li + 1]
        # Constant index_map => single DMA, weights/biases stay VMEM-resident.
        in_specs.append(pl.BlockSpec((kp, np_), lambda i: (0, 0)))
        in_specs.append(pl.BlockSpec((1, np_), lambda i: (0, 0)))
    out_spec = pl.BlockSpec((tb, dims_pad[-1]), lambda i: (i, 0))

    # ---- VMEM budget: resident bf16 weights + double-buffered f32 act tiles
    weight_bytes = sum(int(p.size) * p.dtype.itemsize for p in padded_params)
    act_bytes = 2 * tb * (dims_pad[0] + dims_pad[-1]) * 4
    scratch_bytes = 4 * tb * max(dims_pad) * 4
    vmem_limit = int(min(100 * 2**20,
                         max(8 * 2**20,
                             2 * (weight_bytes + act_bytes + scratch_bytes))))

    kernel = functools.partial(_mlp_kernel, n_layers=n_layers)
    out_pad = pl.pallas_call(
        kernel,
        out_shape=jax.ShapeDtypeStruct((b_pad, dims_pad[-1]), jnp.float32),
        grid=grid,
        in_specs=in_specs,
        out_specs=out_spec,
        compiler_params=pltpu.CompilerParams(
            dimension_semantics=("parallel",),
            vmem_limit_bytes=vmem_limit,
        ),
    )(x_pad, *padded_params)

    # Drop the batch / lane padding.
    return out_pad[:batch, :output_size]


if __name__ == "__main__":
    # Net(width=32, depth=2, input_size=64, output_size=8)
    width, depth, input_size, output_size = 32, 2, 64, 8

    key = jax.random.PRNGKey(0)
    key_x, key_p = jax.random.split(key)

    # Input shaped like a small batch; forward flattens it to (-1, 64).
    x = jax.random.normal(key_x, (2, 4, 4, 4), dtype=jnp.float32)

    params = init_params(key_p, width, depth, input_size, output_size)

    out = net_forward(x, params, input_size)
    out = jax.block_until_ready(out)

    # Pure-JAX reference with the same bf16-weight / f32-accumulate semantics.
    h = x.reshape(-1, input_size)
    for i, (w, b) in enumerate(params):
        h = jnp.dot(h.astype(jnp.bfloat16), w.astype(jnp.bfloat16),
                    preferred_element_type=jnp.float32) + b
        if i < len(params) - 1:
            h = jnp.maximum(h, 0.0)

    assert out.shape == (2, output_size)
    assert jnp.allclose(out, h, atol=2e-3, rtol=2e-3), "mismatch vs reference"

    print("KERNEL_OK")
</pallas_src>

<mosaic_0001>
module attributes {stable_mosaic.version = 11 : i64} {
  func.func @_mlp_kernel(%arg0: i32, %arg1: memref<16x128xf32, #tpu.memory_space<vmem>>, %arg2: memref<128x128xbf16, #tpu.memory_space<vmem>>, %arg3: memref<1x128xf32, #tpu.memory_space<vmem>>, %arg4: memref<128x128xbf16, #tpu.memory_space<vmem>>, %arg5: memref<1x128xf32, #tpu.memory_space<vmem>>, %arg6: memref<128x128xbf16, #tpu.memory_space<vmem>>, %arg7: memref<1x128xf32, #tpu.memory_space<vmem>>, %arg8: memref<128x128xbf16, #tpu.memory_space<vmem>>, %arg9: memref<1x128xf32, #tpu.memory_space<vmem>>, %arg10: memref<16x128xf32, #tpu.memory_space<vmem>>) attributes {dimension_semantics = [#tpu.dimension_semantics<parallel>], iteration_bounds = array<i64: 1>, scalar_prefetch = 0 : i64, scratch_operands = 0 : i64, tpu.core_type = #tpu.core_type<tc>, window_params = [{transform_indices = @transform_0, window_bounds = array<i64: 16, 128>}, {pipeline_mode = #tpu.pipeline_mode<synchronous>, transform_indices = @transform_1, window_bounds = array<i64: 128, 128>}, {pipeline_mode = #tpu.pipeline_mode<synchronous>, transform_indices = @transform_2, window_bounds = array<i64: 1, 128>}, {pipeline_mode = #tpu.pipeline_mode<synchronous>, transform_indices = @transform_3, window_bounds = array<i64: 128, 128>}, {pipeline_mode = #tpu.pipeline_mode<synchronous>, transform_indices = @transform_4, window_bounds = array<i64: 1, 128>}, {pipeline_mode = #tpu.pipeline_mode<synchronous>, transform_indices = @transform_5, window_bounds = array<i64: 128, 128>}, {pipeline_mode = #tpu.pipeline_mode<synchronous>, transform_indices = @transform_6, window_bounds = array<i64: 1, 128>}, {pipeline_mode = #tpu.pipeline_mode<synchronous>, transform_indices = @transform_7, window_bounds = array<i64: 128, 128>}, {pipeline_mode = #tpu.pipeline_mode<synchronous>, transform_indices = @transform_8, window_bounds = array<i64: 1, 128>}, {transform_indices = @transform_9, window_bounds = array<i64: 16, 128>}]} {
    %c0 = arith.constant 0 : index
    %c0_0 = arith.constant 0 : index
    %0 = vector.load %arg1[%c0, %c0_0] : memref<16x128xf32, #tpu.memory_space<vmem>>, vector<16x128xf32>
    %c0_1 = arith.constant 0 : index
    %c0_2 = arith.constant 0 : index
    %1 = vector.load %arg2[%c0_1, %c0_2] : memref<128x128xbf16, #tpu.memory_space<vmem>>, vector<128x128xbf16>
    %c0_3 = arith.constant 0 : index
    %c0_4 = arith.constant 0 : index
    %2 = vector.load %arg3[%c0_3, %c0_4] : memref<1x128xf32, #tpu.memory_space<vmem>>, vector<1x128xf32>
    %3 = arith.truncf %0 : vector<16x128xf32> to vector<16x128xbf16>
    %cst = arith.constant dense<0.000000e+00> : vector<16x128xf32>
    %4 = tpu.matmul %3, %1, %cst {dimension_numbers = #tpu.dot_dimension_numbers<[1], [0], [0], [1], [0, 0, 1, 1], [], []>} : vector<16x128xbf16>, vector<128x128xbf16>, vector<16x128xf32> -> vector<16x128xf32>
    %5 = vector.broadcast %2 : vector<1x128xf32> to vector<16x128xf32>
    %6 = arith.addf %4, %5 : vector<16x128xf32>
    %cst_5 = arith.constant 0.000000e+00 : f32
    %7 = vector.broadcast %cst_5 : f32 to vector<16x128xf32>
    %8 = arith.maximumf %6, %7 : vector<16x128xf32>
    %c0_6 = arith.constant 0 : index
    %c0_7 = arith.constant 0 : index
    %9 = vector.load %arg4[%c0_6, %c0_7] : memref<128x128xbf16, #tpu.memory_space<vmem>>, vector<128x128xbf16>
    %c0_8 = arith.constant 0 : index
    %c0_9 = arith.constant 0 : index
    %10 = vector.load %arg5[%c0_8, %c0_9] : memref<1x128xf32, #tpu.memory_space<vmem>>, vector<1x128xf32>
    %11 = arith.truncf %8 : vector<16x128xf32> to vector<16x128xbf16>
    %cst_10 = arith.constant dense<0.000000e+00> : vector<16x128xf32>
    %12 = tpu.matmul %11, %9, %cst_10 {dimension_numbers = #tpu.dot_dimension_numbers<[1], [0], [0], [1], [0, 0, 1, 1], [], []>} : vector<16x128xbf16>, vector<128x128xbf16>, vector<16x128xf32> -> vector<16x128xf32>
    %13 = vector.broadcast %10 : vector<1x128xf32> to vector<16x128xf32>
    %14 = arith.addf %12, %13 : vector<16x128xf32>
    %cst_11 = arith.constant 0.000000e+00 : f32
    %15 = vector.broadcast %cst_11 : f32 to vector<16x128xf32>
    %16 = arith.maximumf %14, %15 : vector<16x128xf32>
    %c0_12 = arith.constant 0 : index
    %c0_13 = arith.constant 0 : index
    %17 = vector.load %arg6[%c0_12, %c0_13] : memref<128x128xbf16, #tpu.memory_space<vmem>>, vector<128x128xbf16>
    %c0_14 = arith.constant 0 : index
    %c0_15 = arith.constant 0 : index
    %18 = vector.load %arg7[%c0_14, %c0_15] : memref<1x128xf32, #tpu.memory_space<vmem>>, vector<1x128xf32>
    %19 = arith.truncf %16 : vector<16x128xf32> to vector<16x128xbf16>
    %cst_16 = arith.constant dense<0.000000e+00> : vector<16x128xf32>
    %20 = tpu.matmul %19, %17, %cst_16 {dimension_numbers = #tpu.dot_dimension_numbers<[1], [0], [0], [1], [0, 0, 1, 1], [], []>} : vector<16x128xbf16>, vector<128x128xbf16>, vector<16x128xf32> -> vector<16x128xf32>
    %21 = vector.broadcast %18 : vector<1x128xf32> to vector<16x128xf32>
    %22 = arith.addf %20, %21 : vector<16x128xf32>
    %cst_17 = arith.constant 0.000000e+00 : f32
    %23 = vector.broadcast %cst_17 : f32 to vector<16x128xf32>
    %24 = arith.maximumf %22, %23 : vector<16x128xf32>
    %c0_18 = arith.constant 0 : index
    %c0_19 = arith.constant 0 : index
    %25 = vector.load %arg8[%c0_18, %c0_19] : memref<128x128xbf16, #tpu.memory_space<vmem>>, vector<128x128xbf16>
    %c0_20 = arith.constant 0 : index
    %c0_21 = arith.constant 0 : index
    %26 = vector.load %arg9[%c0_20, %c0_21] : memref<1x128xf32, #tpu.memory_space<vmem>>, vector<1x128xf32>
    %27 = arith.truncf %24 : vector<16x128xf32> to vector<16x128xbf16>
    %cst_22 = arith.constant dense<0.000000e+00> : vector<16x128xf32>
    %28 = tpu.matmul %27, %25, %cst_22 {dimension_numbers = #tpu.dot_dimension_numbers<[1], [0], [0], [1], [0, 0, 1, 1], [], []>} : vector<16x128xbf16>, vector<128x128xbf16>, vector<16x128xf32> -> vector<16x128xf32>
    %29 = vector.broadcast %26 : vector<1x128xf32> to vector<16x128xf32>
    %30 = arith.addf %28, %29 : vector<16x128xf32>
    %c0_23 = arith.constant 0 : index
    %c0_24 = arith.constant 0 : index
    %31 = vector.load %arg10[%c0_23, %c0_24] : memref<16x128xf32, #tpu.memory_space<vmem>>, vector<16x128xf32>
    tpu.vector_store %arg10[%c0_23, %c0_24], %30 {strides = array<i32>} : memref<16x128xf32, #tpu.memory_space<vmem>>, vector<16x128xf32>,
    return
  }
  func.func @transform_0(%arg0: i32) -> (i32, i32) {
    %c0_i32 = arith.constant 0 : i32
    %c0_i32_0 = arith.constant 0 : i32
    return %arg0, %c0_i32 : i32, i32
  }
  func.func @transform_1(%arg0: i32) -> (i32, i32) {
    %c0_i32 = arith.constant 0 : i32
    %c0_i32_0 = arith.constant 0 : i32
    %c0_i32_1 = arith.constant 0 : i32
    return %c0_i32, %c0_i32_0 : i32, i32
  }
  func.func @transform_2(%arg0: i32) -> (i32, i32) {
    %c0_i32 = arith.constant 0 : i32
    %c0_i32_0 = arith.constant 0 : i32
    %c0_i32_1 = arith.constant 0 : i32
    return %c0_i32, %c0_i32_0 : i32, i32
  }
  func.func @transform_3(%arg0: i32) -> (i32, i32) {
    %c0_i32 = arith.constant 0 : i32
    %c0_i32_0 = arith.constant 0 : i32
    %c0_i32_1 = arith.constant 0 : i32
    return %c0_i32, %c0_i32_0 : i32, i32
  }
  func.func @transform_4(%arg0: i32) -> (i32, i32) {
    %c0_i32 = arith.constant 0 : i32
    %c0_i32_0 = arith.constant 0 : i32
    %c0_i32_1 = arith.constant 0 : i32
    return %c0_i32, %c0_i32_0 : i32, i32
  }
  func.func @transform_5(%arg0: i32) -> (i32, i32) {
    %c0_i32 = arith.constant 0 : i32
    %c0_i32_0 = arith.constant 0 : i32
    %c0_i32_1 = arith.constant 0 : i32
    return %c0_i32, %c0_i32_0 : i32, i32
  }
  func.func @transform_6(%arg0: i32) -> (i32, i32) {
    %c0_i32 = arith.constant 0 : i32
    %c0_i32_0 = arith.constant 0 : i32
    %c0_i32_1 = arith.constant 0 : i32
    return %c0_i32, %c0_i32_0 : i32, i32
  }
  func.func @transform_7(%arg0: i32) -> (i32, i32) {
    %c0_i32 = arith.constant 0 : i32
    %c0_i32_0 = arith.constant 0 : i32
    %c0_i32_1 = arith.constant 0 : i32
    return %c0_i32, %c0_i32_0 : i32, i32
  }
  func.func @transform_8(%arg0: i32) -> (i32, i32) {
    %c0_i32 = arith.constant 0 : i32
    %c0_i32_0 = arith.constant 0 : i32
    %c0_i32_1 = arith.constant 0 : i32
    return %c0_i32, %c0_i32_0 : i32, i32
  }
  func.func @transform_9(%arg0: i32) -> (i32, i32) {
    %c0_i32 = arith.constant 0 : i32
    %c0_i32_0 = arith.constant 0 : i32
    return %arg0, %c0_i32 : i32, i32
  }
}

</mosaic_0001>

<llo_original>
// kernel: tpu_custom_call.1
$region0: #{tpu_custom_call.1}
  #allocation0 [shape = 'u32[]', space=smem, size = 0x4, offset = 0x4, fixed_abs, tag = 'smem constant byte address 0x4 - core index']
  #allocation1 [shape = 'u32[144,128]{1,0:T(1,128)}', space=vmem, size = 0x12000, scoped, tag = 'internal scratch']
  %s0 = inlined_call_operand.hbm [shape: f32[16,128], index: 0, kind: input, shape index: {}]
  %s1 = inlined_call_operand.hbm [shape: bf16[128,128], index: 1, kind: input, shape index: {}]
  %s2 = inlined_call_operand.vmem [shape: f32[1,128], index: 2, kind: input, shape index: {}]
  %s3 = inlined_call_operand.hbm [shape: bf16[128,128], index: 3, kind: input, shape index: {}]
  %s4 = inlined_call_operand.vmem [shape: f32[1,128], index: 4, kind: input, shape index: {}]
  %s5 = inlined_call_operand.hbm [shape: bf16[128,128], index: 5, kind: input, shape index: {}]
  %s6 = inlined_call_operand.vmem [shape: f32[1,128], index: 6, kind: input, shape index: {}]
  %s7 = inlined_call_operand.hbm [shape: bf16[128,128], index: 7, kind: input, shape index: {}]
  %s8 = inlined_call_operand.vmem [shape: f32[1,128], index: 8, kind: input, shape index: {}]
  %s9 = inlined_call_operand.hbm [shape: f32[16,128], index: 9, kind: output, shape index: {}]
  %s10 = sld [smem:[#allocation0]]
  $region66: #{tpu_custom_call.1} parent=0
    _
  %s12 = ssub.s32 1, %s10
  %s13 = scalar_select 0, %s12, %s10
  $region1: #{tpu_custom_call.1} parent=0
    #allocation2 [shape = 'u8[8192]{0}', space=vmem, size = 0x2000, scoped, tag = 'input window, operand 0, single buffered']
    #allocation3 [shape = 's32[1]{0}', space=sflag, size = 0x4, scoped, tag = 'scoped memory for tpu_custom_call.1']
    #allocation4 [shape = 's32[1]{0}', space=sflag, size = 0x4, scoped, tag = 'scoped memory for tpu_custom_call.1']
    #allocation5 [shape = 'u8[32768]{0}', space=vmem, size = 0x8000, scoped, tag = 'input window, operand 1, single buffered']
    #allocation6 [shape = 's32[1]{0}', space=sflag, size = 0x4, scoped, tag = 'scoped memory for tpu_custom_call.1']
    #allocation7 [shape = 'u8[32768]{0}', space=vmem, size = 0x8000, scoped, tag = 'input window, operand 3, single buffered']
    #allocation8 [shape = 'u8[32768]{0}', space=vmem, size = 0x8000, scoped, tag = 'input window, operand 5, single buffered']
    #allocation9 [shape = 's32[1]{0}', space=sflag, size = 0x4, scoped, tag = 'scoped memory for tpu_custom_call.1']
    #allocation10 [shape = 'u8[32768]{0}', space=vmem, size = 0x8000, scoped, tag = 'input window, operand 7, single buffered']
    #allocation11 [shape = 'u8[8192]{0}', space=vmem, size = 0x2000, scoped, tag = 'output window, operand 0, single buffered']
    %14 = vsyncpa [#allocation3], 0
    %15 = vsyncpa [#allocation6], 0
    %16 = vsyncpa [#allocation9], 0
    %17 = vsyncpa [#allocation4], 0
    // Predicated region
    $region2: #{tpu_custom_call.1} parent=1 // pred_check
      _
    $region3: #{tpu_custom_call.1} parent=1 // pred_check_branch
      %19 = sbr.rel (0) target = $region5
    $region4: #{tpu_custom_call.1} parent=1 // pred_region
      %s21 = ssub.s32 256, 256
      %22 = vsyncadd [#allocation3], %s21
      %s23 = sshll.u32 [#allocation2], 4
      %s24 = int_to_ptr.vmem [resolvable:$true] %s23
      %29 = dma.hbm_to_vmem [thread:$0]  %s0, 256, %s24, [#allocation3], 128, 128, 8
    $region5: #{tpu_custom_call.1} parent=1 // pred_fallthru
      _
    // Predicated region
    $region6: #{tpu_custom_call.1} parent=1 // pred_check
      _
    $region7: #{tpu_custom_call.1} parent=1 // pred_check_branch
      %31 = sbr.rel (0) target = $region9
    $region8: #{tpu_custom_call.1} parent=1 // pred_region
      %s33 = ssub.s32 1024, 1024
      %34 = vsyncadd [#allocation6], %s33
      %s35 = sshll.u32 [#allocation5], 4
      %s36 = int_to_ptr.vmem [resolvable:$true] %s35
      %41 = dma.hbm_to_vmem [thread:$0]  %s1, 1024, %s36, [#allocation6], 64, 64, 4
    $region9: #{tpu_custom_call.1} parent=1 // pred_fallthru
      _
    // Predicated region
    $region10: #{tpu_custom_call.1} parent=1 // pred_check
      _
    $region11: #{tpu_custom_call.1} parent=1 // pred_check_branch
      %43 = sbr.rel (0) target = $region13
    $region12: #{tpu_custom_call.1} parent=1 // pred_region
      _
    $region13: #{tpu_custom_call.1} parent=1 // pred_fallthru
      _
    // Predicated region
    $region14: #{tpu_custom_call.1} parent=1 // pred_check
      _
    $region15: #{tpu_custom_call.1} parent=1 // pred_check_branch
      %45 = sbr.rel (0) target = $region17
    $region16: #{tpu_custom_call.1} parent=1 // pred_region
      %s47 = ssub.s32 1024, 1024
      %48 = vsyncadd [#allocation6], %s47
      %s49 = sshll.u32 [#allocation7], 4
      %s50 = int_to_ptr.vmem [resolvable:$true] %s49
      %55 = dma.hbm_to_vmem [thread:$0]  %s3, 1024, %s50, [#allocation6], 64, 64, 4
    $region17: #{tpu_custom_call.1} parent=1 // pred_fallthru
      _
    // Predicated region
    $region18: #{tpu_custom_call.1} parent=1 // pred_check
      _
    $region19: #{tpu_custom_call.1} parent=1 // pred_check_branch
      %57 = sbr.rel (0) target = $region21
    $region20: #{tpu_custom_call.1} parent=1 // pred_region
      _
    $region21: #{tpu_custom_call.1} parent=1 // pred_fallthru
      _
    // Predicated region
    $region22: #{tpu_custom_call.1} parent=1 // pred_check
      _
    $region23: #{tpu_custom_call.1} parent=1 // pred_check_branch
      %59 = sbr.rel (0) target = $region25
    $region24: #{tpu_custom_call.1} parent=1 // pred_region
      %s61 = ssub.s32 1024, 1024
      %62 = vsyncadd [#allocation9], %s61
      %s63 = sshll.u32 [#allocation8], 4
      %s64 = int_to_ptr.vmem [resolvable:$true] %s63
      %69 = dma.hbm_to_vmem [thread:$0]  %s5, 1024, %s64, [#allocation9], 64, 64, 4
    $region25: #{tpu_custom_call.1} parent=1 // pred_fallthru
      _
    // Predicated region
    $region26: #{tpu_custom_call.1} parent=1 // pred_check
      _
    $region27: #{tpu_custom_call.1} parent=1 // pred_check_branch
      %71 = sbr.rel (0) target = $region29
    $region28: #{tpu_custom_call.1} parent=1 // pred_region
      _
    $region29: #{tpu_custom_call.1} parent=1 // pred_fallthru
      _
    // Predicated region
    $region30: #{tpu_custom_call.1} parent=1 // pred_check
      _
    $region31: #{tpu_custom_call.1} parent=1 // pred_check_branch
      %73 = sbr.rel (0) target = $region33
    $region32: #{tpu_custom_call.1} parent=1 // pred_region
      %s75 = ssub.s32 1024, 1024
      %76 = vsyncadd [#allocation9], %s75
      %s77 = sshll.u32 [#allocation10], 4
      %s78 = int_to_ptr.vmem [resolvable:$true] %s77
      %83 = dma.hbm_to_vmem [thread:$0]  %s7, 1024, %s78, [#allocation9], 64, 64, 4
    $region33: #{tpu_custom_call.1} parent=1 // pred_fallthru
      _
    // Predicated region
    $region34: #{tpu_custom_call.1} parent=1 // pred_check
      _
    $region35: #{tpu_custom_call.1} parent=1 // pred_check_branch
      %85 = sbr.rel (0) target = $region37
    $region36: #{tpu_custom_call.1} parent=1 // pred_region
      _
    $region37: #{tpu_custom_call.1} parent=1 // pred_fallthru
      _
    // Predicated region
    $region38: #{tpu_custom_call.1} parent=1 // pred_check
      _
    $region39: #{tpu_custom_call.1} parent=1 // pred_check_branch
      %87 = sbr.rel (0) target = $region41
    $region40: #{tpu_custom_call.1} parent=1 // pred_region
      %88 = dma.done [#allocation3], 256
    $region41: #{tpu_custom_call.1} parent=1 // pred_fallthru
      _
    // Predicated region
    $region42: #{tpu_custom_call.1} parent=1 // pred_check
      _
    $region43: #{tpu_custom_call.1} parent=1 // pred_check_branch
      %90 = sbr.rel (0) target = $region45
    $region44: #{tpu_custom_call.1} parent=1 // pred_region
      %91 = dma.done [#allocation6], 1024
    $region45: #{tpu_custom_call.1} parent=1 // pred_fallthru
      _
    // Predicated region
    $region46: #{tpu_custom_call.1} parent=1 // pred_check
      _
    $region47: #{tpu_custom_call.1} parent=1 // pred_check_branch
      %93 = sbr.rel (0) target = $region49
    $region48: #{tpu_custom_call.1} parent=1 // pred_region
      %94 = dma.done [#allocation6], 1024
    $region49: #{tpu_custom_call.1} parent=1 // pred_fallthru
      _
    // Predicated region
    $region50: #{tpu_custom_call.1} parent=1 // pred_check
      _
    $region51: #{tpu_custom_call.1} parent=1 // pred_check_branch
      %96 = sbr.rel (0) target = $region53
    $region52: #{tpu_custom_call.1} parent=1 // pred_region
      %97 = dma.done [#allocation9], 1024
    $region53: #{tpu_custom_call.1} parent=1 // pred_fallthru
      _
    // Predicated region
    $region54: #{tpu_custom_call.1} parent=1 // pred_check
      _
    $region55: #{tpu_custom_call.1} parent=1 // pred_check_branch
      %99 = sbr.rel (0) target = $region57
    $region56: #{tpu_custom_call.1} parent=1 // pred_region
      %100 = dma.done [#allocation9], 1024
    $region57: #{tpu_custom_call.1} parent=1 // pred_fallthru
      _
    %v102 = vld [vmem:[#allocation2] sm:$0xff]
    %v103 = vld [vmem:[#allocation2 + $0x8] sm:$0xff]
    %v104 = vld [vmem:[#allocation5] sm:$0xf]
    %v105 = vld [vmem:[#allocation5 + $0x4] sm:$0xf]
    %v106 = vld [vmem:[#allocation5 + $0x8] sm:$0xf]
    %v107 = vld [vmem:[#allocation5 + $0xc] sm:$0xf]
    %v108 = vld [vmem:[#allocation5 + $0x10] sm:$0xf]
    %v109 = vld [vmem:[#allocation5 + $0x14] sm:$0xf]
    %v110 = vld [vmem:[#allocation5 + $0x18] sm:$0xf]
    %v111 = vld [vmem:[#allocation5 + $0x1c] sm:$0xf]
    %v112 = vld [vmem:[#allocation5 + $0x20] sm:$0xf]
    %v113 = vld [vmem:[#allocation5 + $0x24] sm:$0xf]
    %v114 = vld [vmem:[#allocation5 + $0x28] sm:$0xf]
    %v115 = vld [vmem:[#allocation5 + $0x2c] sm:$0xf]
    %v116 = vld [vmem:[#allocation5 + $0x30] sm:$0xf]
    %v117 = vld [vmem:[#allocation5 + $0x34] sm:$0xf]
    %v118 = vld [vmem:[#allocation5 + $0x38] sm:$0xf]
    %v119 = vld [vmem:[#allocation5 + $0x3c] sm:$0xf]
    %v120 = vld [vmem:[%s2] sm:$0x1]
    %v121 = vpack.c.bf16 %v103, %v102
    %v123 = vlaneseq
    %v124 = vshrl.u32 %v123, 7
    %v125 = vsub.s32 0, %v124
    %v126 = vrot.slane %v120, %v125
    %v144 = vunpack.c.l.b16 %v104
    %v145 = vunpack.c.l.b16 %v105
    %v146 = vunpack.c.l.b16 %v106
    %v147 = vunpack.c.l.b16 %v107
    %v148 = vunpack.c.l.b16 %v108
    %v149 = vunpack.c.l.b16 %v109
    %v150 = vunpack.c.l.b16 %v110
    %v151 = vunpack.c.l.b16 %v111
    %v152 = vunpack.c.l.b16 %v112
    %v153 = vunpack.c.l.b16 %v113
    %v154 = vunpack.c.l.b16 %v114
    %v155 = vunpack.c.l.b16 %v115
    %v156 = vunpack.c.l.b16 %v116
    %v157 = vunpack.c.l.b16 %v117
    %v158 = vunpack.c.l.b16 %v118
    %v159 = vunpack.c.l.b16 %v119
    %v160 = vpack.c.b16 %v145, %v144
    %v161 = vpack.c.b16 %v147, %v146
    %v162 = vpack.c.b16 %v149, %v148
    %v163 = vpack.c.b16 %v151, %v150
    %v164 = vpack.c.b16 %v153, %v152
    %v165 = vpack.c.b16 %v155, %v154
    %v166 = vpack.c.b16 %v157, %v156
    %v167 = vpack.c.b16 %v159, %v158
    %176 = vmatprep.subr.bf16.mxu0 0
    %177 = vmatpush1.bf16.msra.mxu0 %v160
    %178 = vmatprep.subr.bf16.mxu0 0
    %179 = vmatpush1.bf16.msra.mxu0 %v161
    %180 = vmatprep.subr.bf16.mxu0 0
    %181 = vmatpush1.bf16.msra.mxu0 %v162
    %182 = vmatprep.subr.bf16.mxu0 0
    %183 = vmatpush1.bf16.msra.mxu0 %v163
    %184 = vmatprep.subr.bf16.mxu0 0
    %185 = vmatpush1.bf16.msra.mxu0 %v164
    %186 = vmatprep.subr.bf16.mxu0 0
    %187 = vmatpush1.bf16.msra.mxu0 %v165
    %188 = vmatprep.subr.bf16.mxu0 0
    %189 = vmatpush1.bf16.msra.mxu0 %v166
    %190 = vmatprep.subr.bf16.mxu0 0
    %191 = vmatpush1.bf16.msra.mxu0 %v167
    %192 = vmatprep.subr.bf16.mxu0 0
    %193 = vmatpush1.bf16.msra.mxu0 0
    %194 = vmatprep.subr.bf16.mxu0 0
    %195 = vmatpush1.bf16.msra.mxu0 0
    %196 = vmatprep.subr.bf16.mxu0 0
    %197 = vmatpush1.bf16.msra.mxu0 0
    %198 = vmatprep.subr.bf16.mxu0 0
    %199 = vmatpush1.bf16.msra.mxu0 0
    %200 = vmatprep.subr.bf16.mxu0 0
    %201 = vmatpush1.bf16.msra.mxu0 0
    %202 = vmatprep.subr.bf16.mxu0 0
    %203 = vmatpush1.bf16.msra.mxu0 0
    %204 = vmatprep.subr.bf16.mxu0 0
    %205 = vmatpush1.bf16.msra.mxu0 0
    %206 = vmatprep.subr.bf16.mxu0 0
    %207 = vmatpush1.bf16.msra.mxu0 0
    %208 = vmatprep.mubr.bf16.mxu0 0
    %209 = vmatmul.mubr.bf16.gmra.mrb[0].mxu0 %v121
    %v210 = vpop.f32.mrb[0].mxu0
    %v211 = vadd.f32 %v126, %v210
    %v212 = vpop.f32.mrb[0].mxu0
    %v213 = vpop.f32.mrb[0].mxu0
    %v214 = vadd.f32 %v126, %v213
    %v215 = vpop.f32.mrb[0].mxu0
    %216 = vdwg.mxu0
    %v217 = vmax.f32 %v211, 0.0
    %v218 = vmax.f32 %v214, 0.0
    %v219 = vld [vmem:[#allocation7] sm:$0xf]
    %v220 = vld [vmem:[#allocation7 + $0x4] sm:$0xf]
    %v221 = vld [vmem:[#allocation7 + $0x8] sm:$0xf]
    %v222 = vld [vmem:[#allocation7 + $0xc] sm:$0xf]
    %v223 = vld [vmem:[#allocation7 + $0x10] sm:$0xf]
    %v224 = vld [vmem:[#allocation7 + $0x14] sm:$0xf]
    %v225 = vld [vmem:[#allocation7 + $0x18] sm:$0xf]
    %v226 = vld [vmem:[#allocation7 + $0x1c] sm:$0xf]
    %v227 = vld [vmem:[#allocation7 + $0x20] sm:$0xf]
    %v228 = vld [vmem:[#allocation7 + $0x24] sm:$0xf]
    %v229 = vld [vmem:[#allocation7 + $0x28] sm:$0xf]
    %v230 = vld [vmem:[#allocation7 + $0x2c] sm:$0xf]
    %v231 = vld [vmem:[#allocation7 + $0x30] sm:$0xf]
    %v232 = vld [vmem:[#allocation7 + $0x34] sm:$0xf]
    %v233 = vld [vmem:[#allocation7 + $0x38] sm:$0xf]
    %v234 = vld [vmem:[#allocation7 + $0x3c] sm:$0xf]
    %v235 = vld [vmem:[%s4] sm:$0x1]
    %v236 = vpack.c.bf16 %v218, %v217
    %v238 = vlaneseq
    %v239 = vshrl.u32 %v238, 7
    %v240 = vsub.s32 0, %v239
    %v241 = vrot.slane %v235, %v240
    %v259 = vunpack.c.l.b16 %v219
    %v260 = vunpack.c.l.b16 %v220
    %v261 = vunpack.c.l.b16 %v221
    %v262 = vunpack.c.l.b16 %v222
    %v263 = vunpack.c.l.b16 %v223
    %v264 = vunpack.c.l.b16 %v224
    %v265 = vunpack.c.l.b16 %v225
    %v266 = vunpack.c.l.b16 %v226
    %v267 = vunpack.c.l.b16 %v227
    %v268 = vunpack.c.l.b16 %v228
    %v269 = vunpack.c.l.b16 %v229
    %v270 = vunpack.c.l.b16 %v230
    %v271 = vunpack.c.l.b16 %v231
    %v272 = vunpack.c.l.b16 %v232
    %v273 = vunpack.c.l.b16 %v233
    %v274 = vunpack.c.l.b16 %v234
    %v275 = vpack.c.b16 %v260, %v259
    %v276 = vpack.c.b16 %v262, %v261
    %v277 = vpack.c.b16 %v264, %v263
    %v278 = vpack.c.b16 %v266, %v265
    %v279 = vpack.c.b16 %v268, %v267
    %v280 = vpack.c.b16 %v270, %v269
    %v281 = vpack.c.b16 %v272, %v271
    %v282 = vpack.c.b16 %v274, %v273
    %291 = vmatprep.subr.bf16.mxu0 0
    %292 = vmatpush1.bf16.msra.mxu0 %v275
    %293 = vmatprep.subr.bf16.mxu0 0
    %294 = vmatpush1.bf16.msra.mxu0 %v276
    %295 = vmatprep.subr.bf16.mxu0 0
    %296 = vmatpush1.bf16.msra.mxu0 %v277
    %297 = vmatprep.subr.bf16.mxu0 0
    %298 = vmatpush1.bf16.msra.mxu0 %v278
    %299 = vmatprep.subr.bf16.mxu0 0
    %300 = vmatpush1.bf16.msra.mxu0 %v279
    %301 = vmatprep.subr.bf16.mxu0 0
    %302 = vmatpush1.bf16.msra.mxu0 %v280
    %303 = vmatprep.subr.bf16.mxu0 0
    %304 = vmatpush1.bf16.msra.mxu0 %v281
    %305 = vmatprep.subr.bf16.mxu0 0
    %306 = vmatpush1.bf16.msra.mxu0 %v282
    %307 = vmatprep.subr.bf16.mxu0 0
    %308 = vmatpush1.bf16.msra.mxu0 0
    %309 = vmatprep.subr.bf16.mxu0 0
    %310 = vmatpush1.bf16.msra.mxu0 0
    %311 = vmatprep.subr.bf16.mxu0 0
    %312 = vmatpush1.bf16.msra.mxu0 0
    %313 = vmatprep.subr.bf16.mxu0 0
    %314 = vmatpush1.bf16.msra.mxu0 0
    %315 = vmatprep.subr.bf16.mxu0 0
    %316 = vmatpush1.bf16.msra.mxu0 0
    %317 = vmatprep.subr.bf16.mxu0 0
    %318 = vmatpush1.bf16.msra.mxu0 0
    %319 = vmatprep.subr.bf16.mxu0 0
    %320 = vmatpush1.bf16.msra.mxu0 0
    %321 = vmatprep.subr.bf16.mxu0 0
    %322 = vmatpush1.bf16.msra.mxu0 0
    %323 = vmatprep.mubr.bf16.mxu0 0
    %324 = vmatmul.mubr.bf16.gmra.mrb[0].mxu0 %v236
    %v325 = vpop.f32.mrb[0].mxu0
    %v326 = vadd.f32 %v241, %v325
    %v327 = vpop.f32.mrb[0].mxu0
    %v328 = vpop.f32.mrb[0].mxu0
    %v329 = vadd.f32 %v241, %v328
    %v330 = vpop.f32.mrb[0].mxu0
    %331 = vdwg.mxu0
    %v332 = vmax.f32 %v326, 0.0
    %v333 = vmax.f32 %v329, 0.0
    %v334 = vld [vmem:[#allocation8] sm:$0xf]
    %v335 = vld [vmem:[#allocation8 + $0x4] sm:$0xf]
    %v336 = vld [vmem:[#allocation8 + $0x8] sm:$0xf]
    %v337 = vld [vmem:[#allocation8 + $0xc] sm:$0xf]
    %v338 = vld [vmem:[#allocation8 + $0x10] sm:$0xf]
    %v339 = vld [vmem:[#allocation8 + $0x14] sm:$0xf]
    %v340 = vld [vmem:[#allocation8 + $0x18] sm:$0xf]
    %v341 = vld [vmem:[#allocation8 + $0x1c] sm:$0xf]
    %v342 = vld [vmem:[#allocation8 + $0x20] sm:$0xf]
    %v343 = vld [vmem:[#allocation8 + $0x24] sm:$0xf]
    %v344 = vld [vmem:[#allocation8 + $0x28] sm:$0xf]
    %v345 = vld [vmem:[#allocation8 + $0x2c] sm:$0xf]
    %v346 = vld [vmem:[#allocation8 + $0x30] sm:$0xf]
    %v347 = vld [vmem:[#allocation8 + $0x34] sm:$0xf]
    %v348 = vld [vmem:[#allocation8 + $0x38] sm:$0xf]
    %v349 = vld [vmem:[#allocation8 + $0x3c] sm:$0xf]
    %v350 = vld [vmem:[%s6] sm:$0x1]
    %v351 = vpack.c.bf16 %v333, %v332
    %v353 = vlaneseq
    %v354 = vshrl.u32 %v353, 7
    %v355 = vsub.s32 0, %v354
    %v356 = vrot.slane %v350, %v355
    %v374 = vunpack.c.l.b16 %v334
    %v375 = vunpack.c.l.b16 %v335
    %v376 = vunpack.c.l.b16 %v336
    %v377 = vunpack.c.l.b16 %v337
    %v378 = vunpack.c.l.b16 %v338
    %v379 = vunpack.c.l.b16 %v339
    %v380 = vunpack.c.l.b16 %v340
    %v381 = vunpack.c.l.b16 %v341
    %v382 = vunpack.c.l.b16 %v342
    %v383 = vunpack.c.l.b16 %v343
    %v384 = vunpack.c.l.b16 %v344
    %v385 = vunpack.c.l.b16 %v345
    %v386 = vunpack.c.l.b16 %v346
    %v387 = vunpack.c.l.b16 %v347
    %v388 = vunpack.c.l.b16 %v348
    %v389 = vunpack.c.l.b16 %v349
    %v390 = vpack.c.b16 %v375, %v374
    %v391 = vpack.c.b16 %v377, %v376
    %v392 = vpack.c.b16 %v379, %v378
    %v393 = vpack.c.b16 %v381, %v380
    %v394 = vpack.c.b16 %v383, %v382
    %v395 = vpack.c.b16 %v385, %v384
    %v396 = vpack.c.b16 %v387, %v386
    %v397 = vpack.c.b16 %v389, %v388
    %406 = vmatprep.subr.bf16.mxu0 0
    %407 = vmatpush1.bf16.msra.mxu0 %v390
    %408 = vmatprep.subr.bf16.mxu0 0
    %409 = vmatpush1.bf16.msra.mxu0 %v391
    %410 = vmatprep.subr.bf16.mxu0 0
    %411 = vmatpush1.bf16.msra.mxu0 %v392
    %412 = vmatprep.subr.bf16.mxu0 0
    %413 = vmatpush1.bf16.msra.mxu0 %v393
    %414 = vmatprep.subr.bf16.mxu0 0
    %415 = vmatpush1.bf16.msra.mxu0 %v394
    %416 = vmatprep.subr.bf16.mxu0 0
    %417 = vmatpush1.bf16.msra.mxu0 %v395
    %418 = vmatprep.subr.bf16.mxu0 0
    %419 = vmatpush1.bf16.msra.mxu0 %v396
    %420 = vmatprep.subr.bf16.mxu0 0
    %421 = vmatpush1.bf16.msra.mxu0 %v397
    %422 = vmatprep.subr.bf16.mxu0 0
    %423 = vmatpush1.bf16.msra.mxu0 0
    %424 = vmatprep.subr.bf16.mxu0 0
    %425 = vmatpush1.bf16.msra.mxu0 0
    %426 = vmatprep.subr.bf16.mxu0 0
    %427 = vmatpush1.bf16.msra.mxu0 0
    %428 = vmatprep.subr.bf16.mxu0 0
    %429 = vmatpush1.bf16.msra.mxu0 0
    %430 = vmatprep.subr.bf16.mxu0 0
    %431 = vmatpush1.bf16.msra.mxu0 0
    %432 = vmatprep.subr.bf16.mxu0 0
    %433 = vmatpush1.bf16.msra.mxu0 0
    %434 = vmatprep.subr.bf16.mxu0 0
    %435 = vmatpush1.bf16.msra.mxu0 0
    %436 = vmatprep.subr.bf16.mxu0 0
    %437 = vmatpush1.bf16.msra.mxu0 0
    %438 = vmatprep.mubr.bf16.mxu0 0
    %439 = vmatmul.mubr.bf16.gmra.mrb[0].mxu0 %v351
    %v440 = vpop.f32.mrb[0].mxu0
    %v441 = vadd.f32 %v356, %v440
    %v442 = vpop.f32.mrb[0].mxu0
    %v443 = vpop.f32.mrb[0].mxu0
    %v444 = vadd.f32 %v356, %v443
    %v445 = vpop.f32.mrb[0].mxu0
    %446 = vdwg.mxu0
    %v447 = vmax.f32 %v441, 0.0
    %v448 = vmax.f32 %v444, 0.0
    %v449 = vld [vmem:[#allocation10] sm:$0xf]
    %v450 = vld [vmem:[#allocation10 + $0x4] sm:$0xf]
    %v451 = vld [vmem:[#allocation10 + $0x8] sm:$0xf]
    %v452 = vld [vmem:[#allocation10 + $0xc] sm:$0xf]
    %v453 = vld [vmem:[#allocation10 + $0x10] sm:$0xf]
    %v454 = vld [vmem:[#allocation10 + $0x14] sm:$0xf]
    %v455 = vld [vmem:[#allocation10 + $0x18] sm:$0xf]
    %v456 = vld [vmem:[#allocation10 + $0x1c] sm:$0xf]
    %v457 = vld [vmem:[#allocation10 + $0x20] sm:$0xf]
    %v458 = vld [vmem:[#allocation10 + $0x24] sm:$0xf]
    %v459 = vld [vmem:[#allocation10 + $0x28] sm:$0xf]
    %v460 = vld [vmem:[#allocation10 + $0x2c] sm:$0xf]
    %v461 = vld [vmem:[#allocation10 + $0x30] sm:$0xf]
    %v462 = vld [vmem:[#allocation10 + $0x34] sm:$0xf]
    %v463 = vld [vmem:[#allocation10 + $0x38] sm:$0xf]
    %v464 = vld [vmem:[#allocation10 + $0x3c] sm:$0xf]
    %v465 = vld [vmem:[%s8] sm:$0x1]
    %v466 = vpack.c.bf16 %v448, %v447
    %v468 = vlaneseq
    %v469 = vshrl.u32 %v468, 7
    %v470 = vsub.s32 0, %v469
    %v471 = vrot.slane %v465, %v470
    %v489 = vunpack.c.l.b16 %v449
    %v490 = vunpack.c.l.b16 %v450
    %v491 = vunpack.c.l.b16 %v451
    %v492 = vunpack.c.l.b16 %v452
    %v493 = vunpack.c.l.b16 %v453
    %v494 = vunpack.c.l.b16 %v454
    %v495 = vunpack.c.l.b16 %v455
    %v496 = vunpack.c.l.b16 %v456
    %v497 = vunpack.c.l.b16 %v457
    %v498 = vunpack.c.l.b16 %v458
    %v499 = vunpack.c.l.b16 %v459
    %v500 = vunpack.c.l.b16 %v460
    %v501 = vunpack.c.l.b16 %v461
    %v502 = vunpack.c.l.b16 %v462
    %v503 = vunpack.c.l.b16 %v463
    %v504 = vunpack.c.l.b16 %v464
    %v505 = vpack.c.b16 %v490, %v489
    %v506 = vpack.c.b16 %v492, %v491
    %v507 = vpack.c.b16 %v494, %v493
    %v508 = vpack.c.b16 %v496, %v495
    %v509 = vpack.c.b16 %v498, %v497
    %v510 = vpack.c.b16 %v500, %v499
    %v511 = vpack.c.b16 %v502, %v501
    %v512 = vpack.c.b16 %v504, %v503
    %521 = vmatprep.subr.bf16.mxu0 0
    %522 = vmatpush1.bf16.msra.mxu0 %v505
    %523 = vmatprep.subr.bf16.mxu0 0
    %524 = vmatpush1.bf16.msra.mxu0 %v506
    %525 = vmatprep.subr.bf16.mxu0 0
    %526 = vmatpush1.bf16.msra.mxu0 %v507
    %527 = vmatprep.subr.bf16.mxu0 0
    %528 = vmatpush1.bf16.msra.mxu0 %v508
    %529 = vmatprep.subr.bf16.mxu0 0
    %530 = vmatpush1.bf16.msra.mxu0 %v509
    %531 = vmatprep.subr.bf16.mxu0 0
    %532 = vmatpush1.bf16.msra.mxu0 %v510
    %533 = vmatprep.subr.bf16.mxu0 0
    %534 = vmatpush1.bf16.msra.mxu0 %v511
    %535 = vmatprep.subr.bf16.mxu0 0
    %536 = vmatpush1.bf16.msra.mxu0 %v512
    %537 = vmatprep.subr.bf16.mxu0 0
    %538 = vmatpush1.bf16.msra.mxu0 0
    %539 = vmatprep.subr.bf16.mxu0 0
    %540 = vmatpush1.bf16.msra.mxu0 0
    %541 = vmatprep.subr.bf16.mxu0 0
    %542 = vmatpush1.bf16.msra.mxu0 0
    %543 = vmatprep.subr.bf16.mxu0 0
    %544 = vmatpush1.bf16.msra.mxu0 0
    %545 = vmatprep.subr.bf16.mxu0 0
    %546 = vmatpush1.bf16.msra.mxu0 0
    %547 = vmatprep.subr.bf16.mxu0 0
    %548 = vmatpush1.bf16.msra.mxu0 0
    %549 = vmatprep.subr.bf16.mxu0 0
    %550 = vmatpush1.bf16.msra.mxu0 0
    %551 = vmatprep.subr.bf16.mxu0 0
    %552 = vmatpush1.bf16.msra.mxu0 0
    %553 = vmatprep.mubr.bf16.mxu0 0
    %554 = vmatmul.mubr.bf16.gmra.mrb[0].mxu0 %v466
    %v555 = vpop.f32.mrb[0].mxu0
    %v556 = vadd.f32 %v471, %v555
    %v557 = vpop.f32.mrb[0].mxu0
    %v558 = vpop.f32.mrb[0].mxu0
    %v559 = vadd.f32 %v471, %v558
    %v560 = vpop.f32.mrb[0].mxu0
    %561 = vdwg.mxu0
    %562 = vst [vmem:[#allocation11] sm:$0xff] %v556
    %563 = vst [vmem:[#allocation11 + $0x8] sm:$0xff] %v559
    // Predicated region
    $region58: #{tpu_custom_call.1} parent=1 // pred_check
      _
    $region59: #{tpu_custom_call.1} parent=1 // pred_check_branch
      %565 = sbr.rel (0) target = $region61
    $region60: #{tpu_custom_call.1} parent=1 // pred_region
      %s567 = ssub.s32 256, 256
      %568 = vsyncadd [#allocation4], %s567
      %s569 = sshll.u32 [#allocation11], 4
      %s570 = int_to_ptr.vmem [resolvable:$true] %s569
      %575 = dma.vmem_to_hbm [thread:$0]  %s570, 256, %s9, [#allocation4], 128, 128, 8
    $region61: #{tpu_custom_call.1} parent=1 // pred_fallthru
      _
    // Predicated region
    $region62: #{tpu_custom_call.1} parent=1 // pred_check
      _
    $region63: #{tpu_custom_call.1} parent=1 // pred_check_branch
      %577 = sbr.rel (0) target = $region65
    $region64: #{tpu_custom_call.1} parent=1 // pred_region
      %578 = dma.done [#allocation4], 256
    $region65: #{tpu_custom_call.1} parent=1 // pred_fallthru
      _
    %579 = vsyncpa [#allocation3], 1
    %580 = vsyncpa [#allocation6], 1
    %581 = vsyncpa [#allocation9], 1
    %582 = vsyncpa [#allocation4], 1

</llo_original>
